<compile_context>
chip_gen: v7x
topology: tpu7x:2x2x1
jax: 0.10.0
libtpu: 0.0.40
codegen_flags: <defaults>
</compile_context>

<pallas_src>
import jax
import jax.numpy as jnp
from jax.experimental import pallas as pl
from jax.experimental.pallas import tpu as pltpu


def _pos_embed_kernel(ar_ids_ref,   # scalar prefetch: (B,) int32 (index_map only)
                      gate_ref,     # (2,) f32 SMEM: [tanh(g), 1 - tanh(g)]
                      emb_ref,      # (p_blk, H) f32 position-embedding block
                      hs_ref,       # (1, t_blk, p_blk, H) hidden-state block
                      tile_ref,     # (1, t_blk, p_blk, H) gathered tile block
                      out_ref):     # (1, t_blk, p_blk, H) output block
    del ar_ids_ref
    g = gate_ref[0]
    one_minus_g = gate_ref[1]
    # Memory-bound op: the f32 upcast / VPU work is free filler under the DMA.
    hs = hs_ref[...].astype(jnp.float32)
    emb = emb_ref[...].astype(jnp.float32)       # broadcasts over (batch, tile)
    tile = tile_ref[...].astype(jnp.float32)
    out_ref[...] = (hs + one_minus_g * emb + g * tile).astype(out_ref.dtype)


def _round_up(x, m):
    return ((x + m - 1) // m) * m


def _vmem_capacity_bytes():
    try:
        return int(pltpu.get_tpu_info().vmem_capacity_bytes)
    except Exception:
        return 64 << 20   # conservative default (v7x per-TC VMEM)


def mllama_precomputed_position_embedding(hidden_state,
                                          aspect_ratio_ids,
                                          gate,
                                          embedding,
                                          tile_embedding_table,
                                          *,
                                          max_num_tiles,
                                          num_patches,
                                          hidden_size,
                                          usable_vmem_bytes=None):
    """hidden_state: (B, T, P, H); aspect_ratio_ids: (B,) int; gate: (1,) f32;
       embedding: (P, H); tile_embedding_table: (num_ids, T*P*H)."""
    B, T, P, H = hidden_state.shape
    assert (T, P, H) == (max_num_tiles, num_patches, hidden_size)
    num_ids = tile_embedding_table.shape[0]
    dtype = hidden_state.dtype
    itemsize = jnp.dtype(dtype).itemsize

    # Row-major reshape of the embedding table -> (num_ids, T, P, H); no copy.
    tile4 = tile_embedding_table.reshape(num_ids, T, P, H)
    # Keep the (tiny) position embedding in f32 regardless of model dtype.
    emb2 = embedding.astype(jnp.float32)
    emb_isz = 4

    # Bounds-check the gather index (BlockSpec gathers have no runtime check).
    ar_ids = jnp.clip(aspect_ratio_ids.astype(jnp.int32), 0, num_ids - 1)

    # Hoisted gate math -> two SMEM scalars.
    g = jnp.tanh(gate.astype(jnp.float32).reshape(-1)[:1])
    gate_vals = jnp.concatenate([g, 1.0 - g])

    # ---------------- block sizing (padding-aware footprint) ----------------
    vmem_cap = _vmem_capacity_bytes()
    usable = (int(vmem_cap * 0.85) if usable_vmem_bytes is None
              else int(usable_vmem_bytes))

    # Sublane packing multiple: f32 -> 8 rows/vreg, bf16 -> 16, int8/fp8 -> 32.
    sub_mult = max(8, 8 * (4 // max(1, itemsize)))
    h_pad = _round_up(H, 128)

    def blk_bytes(t_blk, p_blk, isz):
        return t_blk * _round_up(p_blk, sub_mult) * h_pad * isz

    def footprint(t_blk, p_blk):
        big = blk_bytes(t_blk, p_blk, itemsize)   # hs / tile / out blocks
        emb_blk = blk_bytes(1, p_blk, emb_isz)
        # hs/tile/out double-buffered + emb double-buffered.
        # TODO(synk): single-buffer the constant emb stream (pl.Buffered(1))
        # once buffer_count=1 is universally supported; saves one emb block.
        return 6 * big + 2 * emb_blk

    # 1) Largest divisor of T with full-P blocks that fits the VMEM budget.
    t_blk = None
    p_blk = None
    for d in sorted((d for d in range(1, T + 1) if T % d == 0), reverse=True):
        if footprint(d, P) <= usable:
            t_blk, p_blk = d, P
            break
    # 2) Fallback: split the patch axis into sublane-aligned, lane-dense chunks
    #    (f32 prod shapes on v7x's 64 MiB land here).
    if t_blk is None:
        per_row = h_pad * (6 * itemsize + 2 * emb_isz)
        rows = max(sub_mult, (usable // per_row) // sub_mult * sub_mult)
        t_blk, p_blk = 1, min(rows, P)

    # 3) Megacore: guarantee >= 2 grid steps so both v7x TensorCores stream.
    if B * (T // t_blk) * pl.cdiv(P, p_blk) < 2:
        if T > 1:
            t_blk = max(d for d in range(1, T) if T % d == 0)
        elif P > sub_mult:
            half = _round_up((P + 1) // 2, sub_mult)
            if half < P:
                p_blk = half

    grid = (B, T // t_blk, pl.cdiv(P, p_blk))

    hs_spec = pl.BlockSpec((1, t_blk, p_blk, H), lambda b, t, p, ar: (b, t, p, 0))
    tile_spec = pl.BlockSpec((1, t_blk, p_blk, H),
                             lambda b, t, p, ar: (ar[b], t, p, 0))
    emb_spec = pl.BlockSpec((p_blk, H), lambda b, t, p, ar: (p, 0))
    out_spec = pl.BlockSpec((1, t_blk, p_blk, H), lambda b, t, p, ar: (b, t, p, 0))
    gate_spec = pl.BlockSpec(memory_space=pltpu.SMEM)

    vmem_limit = int(min(max(footprint(t_blk, p_blk) + (4 << 20), 32 << 20),
                         int(vmem_cap * 0.95)))

    grid_spec = pltpu.PrefetchScalarGridSpec(
        num_scalar_prefetch=1,
        grid=grid,
        in_specs=[gate_spec, emb_spec, hs_spec, tile_spec],
        out_specs=out_spec,
    )

    fn = pl.pallas_call(
        _pos_embed_kernel,
        out_shape=jax.ShapeDtypeStruct((B, T, P, H), dtype),
        grid_spec=grid_spec,
        compiler_params=pltpu.CompilerParams(
            dimension_semantics=("parallel", "parallel", "parallel"),
            vmem_limit_bytes=vmem_limit),
    )
    return fn(ar_ids, gate_vals, emb2, hidden_state, tile4)


def _reference(hidden_state, aspect_ratio_ids, gate, embedding, tile_table,
               max_num_tiles, num_patches, hidden_size):
    g = jnp.tanh(gate)  # (1,)
    hs = hidden_state + ((1.0 - g) * embedding)[None, None, :, :]
    tile = tile_table[aspect_ratio_ids].reshape(
        hidden_state.shape[0], max_num_tiles, num_patches, hidden_size)
    return hs + g * tile


if __name__ == "__main__":
    # Small synthetic config consistent with the module's __init__.
    config = dict(max_num_tiles=4,
                  max_aspect_ratio_id=8,
                  image_size=16,
                  patch_size=4,
                  vision_embed_dim=32)
    T = config["max_num_tiles"]
    P = (config["image_size"] // config["patch_size"]) ** 2 + 1   # 17
    H = config["vision_embed_dim"]
    scale = H ** (-0.5)
    num_ids = config["max_aspect_ratio_id"] + 1
    B = 2

    key = jax.random.PRNGKey(0)
    k_hs, k_emb, k_tile, k_ar = jax.random.split(key, 4)

    hidden_state = jax.random.normal(k_hs, (B, T, P, H), jnp.float32)
    aspect_ratio_ids = jax.random.randint(k_ar, (B,), 0, num_ids, jnp.int32)
    # gate is nn.Parameter(torch.zeros(1)); nonzero here so both gating
    # branches are exercised (zeros gives exact parity with torch init).
    gate = jnp.full((1,), 0.3, jnp.float32)
    embedding = scale * jax.random.normal(k_emb, (P, H), jnp.float32)
    tile_table = 0.02 * jax.random.normal(k_tile, (num_ids, T * P * H),
                                          jnp.float32)

    ref = _reference(hidden_state, aspect_ratio_ids, gate, embedding,
                     tile_table, T, P, H)

    # 1) Default path: tile-fused (1, T, P, H) blocks, grid (B, 1, 1).
    out = mllama_precomputed_position_embedding(
        hidden_state, aspect_ratio_ids, gate, embedding, tile_table,
        max_num_tiles=T, num_patches=P, hidden_size=H)
    out = jax.block_until_ready(out)
    assert out.shape == (B, T, P, H)
    assert jnp.allclose(out, ref, atol=1e-5, rtol=1e-5)

    # 2) Forced patch-split path (tiny VMEM budget) -> exercises the
    #    sublane-aligned partial-P blocks chosen on v7x at prod f32 shapes.
    out_split = mllama_precomputed_position_embedding(
        hidden_state, aspect_ratio_ids, gate, embedding, tile_table,
        max_num_tiles=T, num_patches=P, hidden_size=H,
        usable_vmem_bytes=64 << 10)
    out_split = jax.block_until_ready(out_split)
    assert jnp.allclose(out_split, ref, atol=1e-5, rtol=1e-5)

    # 3) B == 1 -> the ">= 2 grid steps" (megacore) rule splits the tile axis.
    out_b1 = mllama_precomputed_position_embedding(
        hidden_state[:1], aspect_ratio_ids[:1], gate, embedding, tile_table,
        max_num_tiles=T, num_patches=P, hidden_size=H)
    out_b1 = jax.block_until_ready(out_b1)
    assert jnp.allclose(out_b1, ref[:1], atol=1e-5, rtol=1e-5)

    print("KERNEL_OK")
</pallas_src>

<mosaic_0001>
module attributes {stable_mosaic.version = 11 : i64} {
  func.func @_pos_embed_kernel(%arg0: i32, %arg1: i32, %arg2: i32, %arg3: memref<2xi32, #tpu.memory_space<smem>>, %arg4: memref<2xf32, #tpu.memory_space<smem>>, %arg5: memref<17x32xf32, #tpu.memory_space<vmem>>, %arg6: memref<1x4x17x32xf32, #tpu.memory_space<vmem>>, %arg7: memref<1x4x17x32xf32, #tpu.memory_space<vmem>>, %arg8: memref<1x4x17x32xf32, #tpu.memory_space<vmem>>) attributes {dimension_semantics = [#tpu.dimension_semantics<parallel>, #tpu.dimension_semantics<parallel>, #tpu.dimension_semantics<parallel>], iteration_bounds = array<i64: 2, 1, 1>, scalar_prefetch = 1 : i64, scratch_operands = 0 : i64, tpu.core_type = #tpu.core_type<tc>, window_params = [{transform_indices = @transform_0, window_bounds = array<i64: 2>}, {transform_indices = @transform_1, window_bounds = array<i64: 17, 32>}, {transform_indices = @transform_2, window_bounds = array<i64: 1, 4, 17, 32>}, {transform_indices = @transform_3, window_bounds = array<i64: 1, 4, 17, 32>}, {transform_indices = @transform_4, window_bounds = array<i64: 1, 4, 17, 32>}]} {
    %c0 = arith.constant 0 : index
    %0 = memref.load %arg4[%c0] : memref<2xf32, #tpu.memory_space<smem>>
    %c1 = arith.constant 1 : index
    %1 = memref.load %arg4[%c1] : memref<2xf32, #tpu.memory_space<smem>>
    %c0_0 = arith.constant 0 : index
    %c0_1 = arith.constant 0 : index
    %c0_2 = arith.constant 0 : index
    %c0_3 = arith.constant 0 : index
    %2 = vector.load %arg6[%c0_0, %c0_1, %c0_2, %c0_3] : memref<1x4x17x32xf32, #tpu.memory_space<vmem>>, vector<1x4x17x32xf32>
    %c0_4 = arith.constant 0 : index
    %c0_5 = arith.constant 0 : index
    %3 = vector.load %arg5[%c0_4, %c0_5] : memref<17x32xf32, #tpu.memory_space<vmem>>, vector<17x32xf32>
    %c0_6 = arith.constant 0 : index
    %c0_7 = arith.constant 0 : index
    %c0_8 = arith.constant 0 : index
    %c0_9 = arith.constant 0 : index
    %4 = vector.load %arg7[%c0_6, %c0_7, %c0_8, %c0_9] : memref<1x4x17x32xf32, #tpu.memory_space<vmem>>, vector<1x4x17x32xf32>
    %5 = vector.broadcast %1 : f32 to vector<17x32xf32>
    %6 = arith.mulf %5, %3 : vector<17x32xf32>
    %7 = vector.shape_cast %6 : vector<17x32xf32> to vector<1x1x17x32xf32>
    %8 = vector.broadcast %7 : vector<1x1x17x32xf32> to vector<1x4x17x32xf32>
    %9 = arith.addf %2, %8 : vector<1x4x17x32xf32>
    %10 = vector.broadcast %0 : f32 to vector<1x4x17x32xf32>
    %11 = arith.mulf %10, %4 : vector<1x4x17x32xf32>
    %12 = arith.addf %9, %11 : vector<1x4x17x32xf32>
    %c0_10 = arith.constant 0 : index
    %c0_11 = arith.constant 0 : index
    %c0_12 = arith.constant 0 : index
    %c0_13 = arith.constant 0 : index
    %13 = vector.load %arg8[%c0_10, %c0_11, %c0_12, %c0_13] : memref<1x4x17x32xf32, #tpu.memory_space<vmem>>, vector<1x4x17x32xf32>
    tpu.vector_store %arg8[%c0_10, %c0_11, %c0_12, %c0_13], %12 {strides = array<i32>} : memref<1x4x17x32xf32, #tpu.memory_space<vmem>>, vector<1x4x17x32xf32>,
    return
  }
  func.func @transform_0(%arg0: i32, %arg1: i32, %arg2: i32, %arg3: memref<2xi32, #tpu.memory_space<smem>>) -> i32 {
    %c0_i32 = arith.constant 0 : i32
    %c0_i32_0 = arith.constant 0 : i32
    return %c0_i32 : i32
  }
  func.func @transform_1(%arg0: i32, %arg1: i32, %arg2: i32, %arg3: memref<2xi32, #tpu.memory_space<smem>>) -> (i32, i32) {
    %c0_i32 = arith.constant 0 : i32
    %c0_i32_0 = arith.constant 0 : i32
    return %arg2, %c0_i32 : i32, i32
  }
  func.func @transform_2(%arg0: i32, %arg1: i32, %arg2: i32, %arg3: memref<2xi32, #tpu.memory_space<smem>>) -> (i32, i32, i32, i32) {
    %c0_i32 = arith.constant 0 : i32
    %c0_i32_0 = arith.constant 0 : i32
    return %arg0, %arg1, %arg2, %c0_i32 : i32, i32, i32, i32
  }
  func.func @transform_3(%arg0: i32, %arg1: i32, %arg2: i32, %arg3: memref<2xi32, #tpu.memory_space<smem>>) -> (i32, i32, i32, i32) {
    %0 = arith.index_cast %arg0 : i32 to index
    %1 = memref.load %arg3[%0] : memref<2xi32, #tpu.memory_space<smem>>
    %c0_i32 = arith.constant 0 : i32
    %c0_i32_0 = arith.constant 0 : i32
    return %1, %arg1, %arg2, %c0_i32 : i32, i32, i32, i32
  }
  func.func @transform_4(%arg0: i32, %arg1: i32, %arg2: i32, %arg3: memref<2xi32, #tpu.memory_space<smem>>) -> (i32, i32, i32, i32) {
    %c0_i32 = arith.constant 0 : i32
    %c0_i32_0 = arith.constant 0 : i32
    return %arg0, %arg1, %arg2, %c0_i32 : i32, i32, i32, i32
  }
}

</mosaic_0001>

<llo_original>
// kernel: tpu_custom_call.1
$region0: #{tpu_custom_call.1}
  #allocation0 [shape = 'u32[]', space=smem, size = 0x4, offset = 0x4, fixed_abs, tag = 'smem constant byte address 0x4 - core index']
  #allocation1 [shape = 'u32[144,128]{1,0:T(1,128)}', space=vmem, size = 0x12000, scoped, tag = 'internal scratch']
  #allocation2 [shape = 's32[1]{0}', space=sflag, size = 0x4, scoped, tag = 'scoped memory for tpu_custom_call.1']
  #allocation3 [shape = 'u8[512]{0}', space=smem, size = 0x200, scoped, tag = 'prefetched SMEM operand 0']
  %s0 = inlined_call_operand.vmem [shape: s32[2], index: 0, kind: input, shape index: {}]
  %s1 = inlined_call_operand.vmem [shape: f32[2], index: 1, kind: input, shape index: {}]
  %s2 = inlined_call_operand.vmem [shape: f32[17,32], index: 2, kind: input, shape index: {}]
  %s3 = inlined_call_operand.vmem [shape: f32[2,4,17,32], index: 3, kind: input, shape index: {}]
  %s4 = inlined_call_operand.vmem [shape: f32[9,4,17,32], index: 4, kind: input, shape index: {}]
  %s5 = inlined_call_operand.vmem [shape: f32[2,4,17,32], index: 5, kind: output, shape index: {}]
  %s6 = sld [smem:[#allocation0]]
  $region53: #{tpu_custom_call.1} parent=0
    _
  %s8 = ssub.s32 1, %s6
  %s9 = scalar_select 0, %s8, %s6
  %s10 = sshll.u32 %s0, 4
  %s11 = int_to_ptr.vmem [resolvable:$true] %s10
  %13 = dma.vmem_to_smem %s11, 16, [#allocation3], [#allocation2]
  %14 = dma.done [#allocation2], 16
  %15 = sfence
  $region1: #{tpu_custom_call.1} parent=0
    #allocation4 [shape = 'u8[512]{0}', space=smem, size = 0x200, scoped, tag = 'input window, operand 1, single buffered']
    #allocation5 [shape = 's32[2]{0}', space=sflag, size = 0x8, scoped, tag = 'scoped memory for tpu_custom_call.1']
    %16 = vsyncpa [#allocation5], 0
    loop: start=0, step=1, limit=4
    $region2: #{tpu_custom_call.1} parent=1 // loop_pre_header
      _
    $region3: #{tpu_custom_call.1} parent=1 // loop_header
      %s18 = sphi 0, %s22
      %p19 = scmp.ge.s32.totalorder %s18, 4
      %s25 = sphi 0, %s44
      %s26 = sphi 0, %s40
      %s27 = sphi 0, %s36
      %s28 = sphi 0, %s25
      %s29 = sphi 0, %s26
      %s30 = sphi 0, %s27
      %s31 = sphi 0, %s28
      %s32 = sphi 0, %s29
      %s33 = sphi 0, %s30
      %s45 = sphi 0, %s45
      %s47 = sphi 0, %s45
      %s48 = sphi 0, %s47
      %s62 = sphi 0, %s48
      %s68 = sphi 0, %s70
      %s71 = sphi 0, %s68
      %s72 = sphi 0, %s71
      %s88 = sphi 0, %s72
      %s98 = sphi 0, %s100
      %s101 = sphi 0, %s98
      %s102 = sphi 0, %s101
      %s118 = sphi 0, %s102
      %s130 = sphi 0, %s132
      %s133 = sphi 0, %s130
      %s134 = sphi 0, %s133
      %s150 = sphi 0, %s134
      %s160 = sphi 0, %s162
      %s163 = sphi 0, %s160
      %s164 = sphi 0, %s163
      %s180 = sphi 0, %s164
    $region4: #{tpu_custom_call.1} parent=1 // loop_header_branch
      %21 = sbr.rel (%p19) target = $region8
    $region5: #{tpu_custom_call.1} parent=1 // loop_body
      %s23 = ssub.s32 %s18, 1
      %s24 = ssub.s32 %s18, 2
      %s34 = sadd.s32 1, %s27
      %p35 = scmp.ge.s32.totalorder %s34, 1
      %s36 = scalar_select %p35, 0, %s34
      %s37 = sadd.s32 1, %s26
      %s38 = scalar_select %p35, %s37, %s26
      %p39 = scmp.ge.s32.totalorder %s38, 1
      %s40 = scalar_select %p39, 0, %s38
      %s41 = sadd.s32 1, %s25
      %s42 = scalar_select %p39, %s41, %s25
      %p43 = scmp.ge.s32.totalorder %s42, 2
      %s44 = scalar_select %p43, 0, %s42
      %s46 = sadd.s32 %s45, 1
      %p49 = scmp.eq.s32.totalorder %s18, 1
      %p50 = scmp.ne.s32.totalorder %s45, %s47
      %p51 = scmp.eq.s32.totalorder %s18, 0
      %p52 = por %p50, %p51
      %p53 = scmp.ne.s32.totalorder %s45, %s47
      %p54 = scmp.eq.s32.totalorder %s23, 1
      %p55 = por %p53, %p54
      %p56 = scmp.ne.s32.totalorder %s47, %s48
      %p57 = scmp.eq.s32.totalorder %s23, 0
      %p58 = por %p56, %p57
      %p59 = scmp.ne.s32.totalorder %s47, %s48
      %p60 = scmp.eq.s32.totalorder %s24, 1
      %p61 = por %p59, %p60
      %p63 = scmp.ne.s32.totalorder %s48, %s62
      %p64 = scmp.eq.s32.totalorder %s24, 0
      %p65 = por %p63, %p64
      %s66 = ssub.s32 %s27, %s36
      %p67 = scmp.eq.s32.totalorder %s66, 0
      %s69 = sadd.s32 %s68, 1
      %s70 = scalar_select %p67, %s68, %s69
      %p73 = pneg %p67
      %p74 = scmp.eq.s32.totalorder %s18, 1
      %p75 = por %p73, %p74
      %p76 = scmp.ne.s32.totalorder %s68, %s71
      %p77 = scmp.eq.s32.totalorder %s18, 0
      %p78 = por %p76, %p77
      %p79 = scmp.ne.s32.totalorder %s68, %s71
      %p80 = scmp.eq.s32.totalorder %s23, 1
      %p81 = por %p79, %p80
      %p82 = scmp.ne.s32.totalorder %s71, %s72
      %p83 = scmp.eq.s32.totalorder %s23, 0
      %p84 = por %p82, %p83
      %p85 = scmp.ne.s32.totalorder %s71, %s72
      %p86 = scmp.eq.s32.totalorder %s24, 1
      %p87 = por %p85, %p86
      %p89 = scmp.ne.s32.totalorder %s72, %s88
      %p90 = scmp.eq.s32.totalorder %s24, 0
      %p91 = por %p89, %p90
      %s92 = ssub.s32 %s25, %s44
      %s93 = ssub.s32 %s26, %s40
      %s94 = sor.u32 %s92, %s93
      %s95 = ssub.s32 %s27, %s36
      %s96 = sor.u32 %s94, %s95
      %p97 = scmp.eq.s32.totalorder %s96, 0
      %s99 = sadd.s32 %s98, 1
      %s100 = scalar_select %p97, %s98, %s99
      %p103 = pneg %p97
      %p104 = scmp.eq.s32.totalorder %s18, 1
      %p105 = por %p103, %p104
      %p106 = scmp.ne.s32.totalorder %s98, %s101
      %p107 = scmp.eq.s32.totalorder %s18, 0
      %p108 = por %p106, %p107
      %p109 = scmp.ne.s32.totalorder %s98, %s101
      %p110 = scmp.eq.s32.totalorder %s23, 1
      %p111 = por %p109, %p110
      %p112 = scmp.ne.s32.totalorder %s101, %s102
      %p113 = scmp.eq.s32.totalorder %s23, 0
      %p114 = por %p112, %p113
      %p115 = scmp.ne.s32.totalorder %s101, %s102
      %p116 = scmp.eq.s32.totalorder %s24, 1
      %p117 = por %p115, %p116
      %p119 = scmp.ne.s32.totalorder %s102, %s118
      %p120 = scmp.eq.s32.totalorder %s24, 0
      %p121 = por %p119, %p120
      %s122 = sld [smem:[#allocation3 + %s25]]
      %s123 = sld [smem:[#allocation3 + %s44]]
      %s124 = ssub.s32 %s122, %s123
      %s125 = ssub.s32 %s26, %s40
      %s126 = sor.u32 %s124, %s125
      %s127 = ssub.s32 %s27, %s36
      %s128 = sor.u32 %s126, %s127
      %p129 = scmp.eq.s32.totalorder %s128, 0
      %s131 = sadd.s32 %s130, 1
      %s132 = scalar_select %p129, %s130, %s131
      %p135 = pneg %p129
      %p136 = scmp.eq.s32.totalorder %s18, 1
      %p137 = por %p135, %p136
      %p138 = scmp.ne.s32.totalorder %s130, %s133
      %p139 = scmp.eq.s32.totalorder %s18, 0
      %p140 = por %p138, %p139
      %p141 = scmp.ne.s32.totalorder %s130, %s133
      %p142 = scmp.eq.s32.totalorder %s23, 1
      %p143 = por %p141, %p142
      %p144 = scmp.ne.s32.totalorder %s133, %s134
      %p145 = scmp.eq.s32.totalorder %s23, 0
      %p146 = por %p144, %p145
      %p147 = scmp.ne.s32.totalorder %s133, %s134
      %p148 = scmp.eq.s32.totalorder %s24, 1
      %p149 = por %p147, %p148
      %p151 = scmp.ne.s32.totalorder %s134, %s150
      %p152 = scmp.eq.s32.totalorder %s24, 0
      %p153 = por %p151, %p152
      %s154 = ssub.s32 %s25, %s44
      %s155 = ssub.s32 %s26, %s40
      %s156 = sor.u32 %s154, %s155
      %s157 = ssub.s32 %s27, %s36
      %s158 = sor.u32 %s156, %s157
      %p159 = scmp.eq.s32.totalorder %s158, 0
      %s161 = sadd.s32 %s160, 1
      %s162 = scalar_select %p159, %s160, %s161
      %p165 = pneg %p159
      %p166 = scmp.eq.s32.totalorder %s18, 1
      %p167 = por %p165, %p166
      %p168 = scmp.ne.s32.totalorder %s160, %s163
      %p169 = scmp.eq.s32.totalorder %s18, 0
      %p170 = por %p168, %p169
      %p171 = scmp.ne.s32.totalorder %s160, %s163
      %p172 = scmp.eq.s32.totalorder %s23, 1
      %p173 = por %p171, %p172
      %p174 = scmp.ne.s32.totalorder %s163, %s164
      %p175 = scmp.eq.s32.totalorder %s23, 0
      %p176 = por %p174, %p175
      %p177 = scmp.ne.s32.totalorder %s163, %s164
      %p178 = scmp.eq.s32.totalorder %s24, 1
      %p179 = por %p177, %p178
      %p181 = scmp.ne.s32.totalorder %s164, %s180
      %p182 = scmp.eq.s32.totalorder %s24, 0
      %p183 = por %p181, %p182
      %p184 = scmp.le.s32.totalorder 1, %s18
      %p185 = scmp.lt.s32.totalorder %s18, 3
      %p186 = pnand %p184, %p185
      %p187 = pneg %p186
      // Predicated region
      $region9: #{tpu_custom_call.1} parent=5 // pred_check
        _
      $region10: #{tpu_custom_call.1} parent=5 // pred_check_branch
        %189 = sbr.rel (%p186) target = $region12
      $region11: #{tpu_custom_call.1} parent=5 // pred_region
        %s190 = ssub.s32 %s18, 1
        // Predicated region
        $region13: #{tpu_custom_call.1} parent=11 // pred_check
          %p191 = pneg %p58
        $region14: #{tpu_custom_call.1} parent=11 // pred_check_branch
          %193 = sbr.rel (%p191) target = $region16
        $region15: #{tpu_custom_call.1} parent=11 // pred_region
          %s195 = ssub.s32 16, 16
          %196 = vsyncadd [#allocation5], %s195
          %s198 = sshll.u32 %s1, 4
          %s199 = int_to_ptr.vmem [resolvable:$true] %s198
          %201 = dma.vmem_to_smem %s199, 16, [#allocation4], [#allocation5]
        $region16: #{tpu_custom_call.1} parent=11 // pred_fallthru
          _
        // Predicated region
        $region17: #{tpu_custom_call.1} parent=11 // pred_check
          %p202 = pneg %p84
        $region18: #{tpu_custom_call.1} parent=11 // pred_check_branch
          %204 = sbr.rel (%p202) target = $region20
        $region19: #{tpu_custom_call.1} parent=11 // pred_region
          %s205 = smul.u32 3, %s30
          %p206 = scmp.lt.s32.totalorder %s205, 2
          %s207 = scalar_select %p206, %s205, 2
          %s208 = smul.addr %s207, 8
          %s209 = scalar_lea.vmem %s2, %s208
          %s210 = smul.u32 3, %s30
        $region20: #{tpu_custom_call.1} parent=11 // pred_fallthru
          _
      $region12: #{tpu_custom_call.1} parent=5 // pred_fallthru
        _
      %p211 = scmp.lt.s32.totalorder %s18, 2
      // Predicated region
      $region21: #{tpu_custom_call.1} parent=5 // pred_check
        %p212 = pneg %p211
      $region22: #{tpu_custom_call.1} parent=5 // pred_check_branch
        %214 = sbr.rel (%p212) target = $region24
      $region23: #{tpu_custom_call.1} parent=5 // pred_region
        // Predicated region
        $region25: #{tpu_custom_call.1} parent=23 // pred_check
          %p215 = pneg %p108
        $region26: #{tpu_custom_call.1} parent=23 // pred_check_branch
          %217 = sbr.rel (%p215) target = $region28
        $region27: #{tpu_custom_call.1} parent=23 // pred_region
          %s218 = smul.u32 4, %s26
          %s219 = smul.u32 3, %s27
          %p220 = scmp.lt.s32.totalorder %s25, 1
          %s221 = scalar_select %p220, %s25, 1
          %p222 = scmp.lt.s32.totalorder %s218, 3
          %s223 = scalar_select %p222, %s218, 3
          %p224 = scmp.lt.s32.totalorder %s219, 2
          %s225 = scalar_select %p224, %s219, 2
          %s226 = smul.addr %s223, 3
          %s227 = sadd.s32 %s225, %s226
          %s228 = smul.addr %s221, 12
          %s229 = sadd.s32 %s227, %s228
          %s230 = smul.addr %s229, 8
          %s231 = scalar_lea.vmem %s3, %s230
          %s232 = smul.u32 4, %s26
          %s233 = smul.u32 3, %s27
        $region28: #{tpu_custom_call.1} parent=23 // pred_fallthru
          _
        // Predicated region
        $region29: #{tpu_custom_call.1} parent=23 // pred_check
          %p234 = pneg %p140
        $region30: #{tpu_custom_call.1} parent=23 // pred_check_branch
          %236 = sbr.rel (%p234) target = $region32
        $region31: #{tpu_custom_call.1} parent=23 // pred_region
          %s237 = sld [smem:[#allocation3 + %s25]]
          %s238 = smul.u32 4, %s26
          %s239 = smul.u32 3, %s27
          %p240 = scmp.lt.s32.totalorder %s237, 8
          %s241 = scalar_select %p240, %s237, 8
          %p242 = scmp.lt.s32.totalorder %s238, 3
          %s243 = scalar_select %p242, %s238, 3
          %p244 = scmp.lt.s32.totalorder %s239, 2
          %s245 = scalar_select %p244, %s239, 2
          %s246 = smul.addr %s243, 3
          %s247 = sadd.s32 %s245, %s246
          %s248 = smul.addr %s241, 12
          %s249 = sadd.s32 %s247, %s248
          %s250 = smul.addr %s249, 8
          %s251 = scalar_lea.vmem %s4, %s250
          %s252 = sld [smem:[#allocation3 + %s25]]
          %s253 = smul.u32 4, %s26
          %s254 = smul.u32 3, %s27
        $region32: #{tpu_custom_call.1} parent=23 // pred_fallthru
          _
      $region24: #{tpu_custom_call.1} parent=5 // pred_fallthru
        _
      %p255 = scmp.le.s32.totalorder 1, %s18
      %p256 = scmp.lt.s32.totalorder %s18, 3
      %p257 = pnand %p255, %p256
      %p258 = pneg %p257
      // Predicated region
      $region33: #{tpu_custom_call.1} parent=5 // pred_check
        _
      $region34: #{tpu_custom_call.1} parent=5 // pred_check_branch
        %260 = sbr.rel (%p257) target = $region36
      $region35: #{tpu_custom_call.1} parent=5 // pred_region
        %s261 = ssub.s32 %s18, 1
        // Predicated region
        $region37: #{tpu_custom_call.1} parent=35 // pred_check
          %p262 = pneg %p58
        $region38: #{tpu_custom_call.1} parent=35 // pred_check_branch
          %264 = sbr.rel (%p262) target = $region40
        $region39: #{tpu_custom_call.1} parent=35 // pred_region
          %265 = dma.done [#allocation5], 16
        $region40: #{tpu_custom_call.1} parent=35 // pred_fallthru
          _
        %266 = sfence
        %p267 = pneg %p58
        %p268 = pneg %p55
        %s269 = smul.u32 3, %s30
        %p270 = scmp.lt.s32.totalorder %s269, 2
        %s271 = scalar_select %p270, %s269, 2
        %s272 = smul.addr %s271, 8
        %s273 = scalar_lea.vmem %s2, %s272
        %p274 = pneg %p84
        %p275 = pneg %p81
        %s276 = smul.u32 4, %s29
        %s277 = smul.u32 3, %s30
        %p278 = scmp.lt.s32.totalorder %s28, 1
        %s279 = scalar_select %p278, %s28, 1
        %p280 = scmp.lt.s32.totalorder %s276, 3
        %s281 = scalar_select %p280, %s276, 3
        %p282 = scmp.lt.s32.totalorder %s277, 2
        %s283 = scalar_select %p282, %s277, 2
        %s284 = smul.addr %s281, 3
        %s285 = sadd.s32 %s283, %s284
        %s286 = smul.addr %s279, 12
        %s287 = sadd.s32 %s285, %s286
        %s288 = smul.addr %s287, 8
        %s289 = scalar_lea.vmem %s3, %s288
        %p290 = pneg %p114
        %p291 = pneg %p111
        %s292 = sld [smem:[#allocation3 + %s28]]
        %s293 = smul.u32 4, %s29
        %s294 = smul.u32 3, %s30
        %p295 = scmp.lt.s32.totalorder %s292, 8
        %s296 = scalar_select %p295, %s292, 8
        %p297 = scmp.lt.s32.totalorder %s293, 3
        %s298 = scalar_select %p297, %s293, 3
        %p299 = scmp.lt.s32.totalorder %s294, 2
        %s300 = scalar_select %p299, %s294, 2
        %s301 = smul.addr %s298, 3
        %s302 = sadd.s32 %s300, %s301
        %s303 = smul.addr %s296, 12
        %s304 = sadd.s32 %s302, %s303
        %s305 = smul.addr %s304, 8
        %s306 = scalar_lea.vmem %s4, %s305
        %p307 = pneg %p146
        %p308 = pneg %p143
        %p309 = pneg %p176
        %p310 = pneg %p173
        %s311 = smul.u32 4, %s29
        %s312 = smul.u32 3, %s30
        %p313 = scmp.lt.s32.totalorder %s28, 1
        %s314 = scalar_select %p313, %s28, 1
        %p315 = scmp.lt.s32.totalorder %s311, 3
        %s316 = scalar_select %p315, %s311, 3
        %p317 = scmp.lt.s32.totalorder %s312, 2
        %s318 = scalar_select %p317, %s312, 2
        %s319 = smul.addr %s316, 3
        %s320 = sadd.s32 %s318, %s319
        %s321 = smul.addr %s314, 12
        %s322 = sadd.s32 %s320, %s321
        %s323 = smul.addr %s322, 8
        %s324 = scalar_lea.vmem %s5, %s323
        %s325 = smul.u32 3, %s30
        %p326 = scmp.lt.s32.totalorder %s325, 2
        %s327 = scalar_select %p326, %s325, 2
        %s328 = smul.addr %s327, 8
        %s329 = scalar_lea.vmem %s2, %s328
        %s330 = smul.u32 3, %s30
        %s331 = smul.u32 4, %s29
        %s332 = smul.u32 3, %s30
        %p333 = scmp.lt.s32.totalorder %s28, 1
        %s334 = scalar_select %p333, %s28, 1
        %p335 = scmp.lt.s32.totalorder %s331, 3
        %s336 = scalar_select %p335, %s331, 3
        %p337 = scmp.lt.s32.totalorder %s332, 2
        %s338 = scalar_select %p337, %s332, 2
        %s339 = smul.addr %s336, 3
        %s340 = sadd.s32 %s338, %s339
        %s341 = smul.addr %s334, 12
        %s342 = sadd.s32 %s340, %s341
        %s343 = smul.addr %s342, 8
        %s344 = scalar_lea.vmem %s3, %s343
        %s345 = smul.u32 4, %s29
        %s346 = smul.u32 3, %s30
        %s347 = sld [smem:[#allocation3 + %s28]]
        %s348 = smul.u32 4, %s29
        %s349 = smul.u32 3, %s30
        %p350 = scmp.lt.s32.totalorder %s347, 8
        %s351 = scalar_select %p350, %s347, 8
        %p352 = scmp.lt.s32.totalorder %s348, 3
        %s353 = scalar_select %p352, %s348, 3
        %p354 = scmp.lt.s32.totalorder %s349, 2
        %s355 = scalar_select %p354, %s349, 2
        %s356 = smul.addr %s353, 3
        %s357 = sadd.s32 %s355, %s356
        %s358 = smul.addr %s351, 12
        %s359 = sadd.s32 %s357, %s358
        %s360 = smul.addr %s359, 8
        %s361 = scalar_lea.vmem %s4, %s360
        %s362 = sld [smem:[#allocation3 + %s28]]
        %s363 = smul.u32 4, %s29
        %s364 = smul.u32 3, %s30
        %s365 = smul.u32 4, %s29
        %s366 = smul.u32 3, %s30
        %p367 = scmp.lt.s32.totalorder %s28, 1
        %s368 = scalar_select %p367, %s28, 1
        %p369 = scmp.lt.s32.totalorder %s365, 3
        %s370 = scalar_select %p369, %s365, 3
        %p371 = scmp.lt.s32.totalorder %s366, 2
        %s372 = scalar_select %p371, %s366, 2
        %s373 = smul.addr %s370, 3
        %s374 = sadd.s32 %s372, %s373
        %s375 = smul.addr %s368, 12
        %s376 = sadd.s32 %s374, %s375
        %s377 = smul.addr %s376, 8
        %s378 = scalar_lea.vmem %s5, %s377
        %s379 = smul.u32 4, %s29
        %s380 = smul.u32 3, %s30
        %s381 = sld [smem:[#allocation4]]
        %s382 = sld [smem:[#allocation4 + $0x1]]
        %v383 = vld [vmem:[%s344] sm:$0xff]
        %v384 = vld [vmem:[%s344 + $0x8] sm:$0xff]
        %v385 = vld [vmem:[%s344 + $0x10] sm:$0x1]
        %v386 = vld [vmem:[%s344 + $0x18] sm:$0xff]
        %v387 = vld [vmem:[%s344 + $0x20] sm:$0xff]
        %v388 = vld [vmem:[%s344 + $0x28] sm:$0x1]
        %v389 = vld [vmem:[%s344 + $0x30] sm:$0xff]
        %v390 = vld [vmem:[%s344 + $0x38] sm:$0xff]
        %v391 = vld [vmem:[%s344 + $0x40] sm:$0x1]
        %v392 = vld [vmem:[%s344 + $0x48] sm:$0xff]
        %v393 = vld [vmem:[%s344 + $0x50] sm:$0xff]
        %v394 = vld [vmem:[%s344 + $0x58] sm:$0x1]
        %v395 = vld [vmem:[%s329] sm:$0xff]
        %v396 = vld [vmem:[%s329 + $0x8] sm:$0xff]
        %v397 = vld [vmem:[%s329 + $0x10] sm:$0x1]
        %v398 = vld [vmem:[%s361] sm:$0xff]
        %v399 = vld [vmem:[%s361 + $0x8] sm:$0xff]
        %v400 = vld [vmem:[%s361 + $0x10] sm:$0x1]
        %v401 = vld [vmem:[%s361 + $0x18] sm:$0xff]
        %v402 = vld [vmem:[%s361 + $0x20] sm:$0xff]
        %v403 = vld [vmem:[%s361 + $0x28] sm:$0x1]
        %v404 = vld [vmem:[%s361 + $0x30] sm:$0xff]
        %v405 = vld [vmem:[%s361 + $0x38] sm:$0xff]
        %v406 = vld [vmem:[%s361 + $0x40] sm:$0x1]
        %v407 = vld [vmem:[%s361 + $0x48] sm:$0xff]
        %v408 = vld [vmem:[%s361 + $0x50] sm:$0xff]
        %v409 = vld [vmem:[%s361 + $0x58] sm:$0x1]
        %v410 = vstv %s382
        %v411 = vmul.f32 %v410, %v395
        %v412 = vmul.f32 %v410, %v396
        %v413 = vmul.f32 %v410, %v397
        %v414 = vadd.f32 %v383, %v411
        %v415 = vadd.f32 %v384, %v412
        %v416 = vadd.f32 %v385, %v413
        %v417 = vadd.f32 %v386, %v411
        %v418 = vadd.f32 %v387, %v412
        %v419 = vadd.f32 %v388, %v413
        %v420 = vadd.f32 %v389, %v411
        %v421 = vadd.f32 %v390, %v412
        %v422 = vadd.f32 %v391, %v413
        %v423 = vadd.f32 %v392, %v411
        %v424 = vadd.f32 %v393, %v412
        %v425 = vadd.f32 %v394, %v413
        %v426 = vstv %s381
        %v427 = vmul.f32 %v426, %v398
        %v428 = vmul.f32 %v426, %v399
        %v429 = vmul.f32 %v426, %v400
        %v430 = vmul.f32 %v426, %v401
        %v431 = vmul.f32 %v426, %v402
        %v432 = vmul.f32 %v426, %v403
        %v433 = vmul.f32 %v426, %v404
        %v434 = vmul.f32 %v426, %v405
        %v435 = vmul.f32 %v426, %v406
        %v436 = vmul.f32 %v426, %v407
        %v437 = vmul.f32 %v426, %v408
        %v438 = vmul.f32 %v426, %v409
        %v439 = vadd.f32 %v414, %v427
        %v440 = vadd.f32 %v415, %v428
        %v441 = vadd.f32 %v416, %v429
        %v442 = vadd.f32 %v417, %v430
        %v443 = vadd.f32 %v418, %v431
        %v444 = vadd.f32 %v419, %v432
        %v445 = vadd.f32 %v420, %v433
        %v446 = vadd.f32 %v421, %v434
        %v447 = vadd.f32 %v422, %v435
        %v448 = vadd.f32 %v423, %v436
        %v449 = vadd.f32 %v424, %v437
        %v450 = vadd.f32 %v425, %v438
        %vm451 = vcmask 261120
        %452 = vst.msk [vmem:[%s378] sm:$0xff] %vm451, %v439
        %453 = vst.msk [vmem:[%s378 + $0x8] sm:$0xff] %vm451, %v440
        %vm454 = vcmask 253952
        %455 = vst.msk [vmem:[%s378 + $0x10] sm:$0x1] %vm454, %v441
        %456 = vst.msk [vmem:[%s378 + $0x18] sm:$0xff] %vm451, %v442
        %457 = vst.msk [vmem:[%s378 + $0x20] sm:$0xff] %vm451, %v443
        %458 = vst.msk [vmem:[%s378 + $0x28] sm:$0x1] %vm454, %v444
        %459 = vst.msk [vmem:[%s378 + $0x30] sm:$0xff] %vm451, %v445
        %460 = vst.msk [vmem:[%s378 + $0x38] sm:$0xff] %vm451, %v446
        %461 = vst.msk [vmem:[%s378 + $0x40] sm:$0x1] %vm454, %v447
        %462 = vst.msk [vmem:[%s378 + $0x48] sm:$0xff] %vm451, %v448
        %463 = vst.msk [vmem:[%s378 + $0x50] sm:$0xff] %vm451, %v449
        %464 = vst.msk [vmem:[%s378 + $0x58] sm:$0x1] %vm454, %v450
        %s465 = smul.u32 4, %s29
        %s466 = smul.u32 3, %s30
        %p467 = scmp.lt.s32.totalorder %s28, 1
        %s468 = scalar_select %p467, %s28, 1
        %p469 = scmp.lt.s32.totalorder %s465, 3
        %s470 = scalar_select %p469, %s465, 3
        %p471 = scmp.lt.s32.totalorder %s466, 2
        %s472 = scalar_select %p471, %s466, 2
        %s473 = smul.addr %s470, 3
        %s474 = sadd.s32 %s472, %s473
        %s475 = smul.addr %s468, 12
        %s476 = sadd.s32 %s474, %s475
        %s477 = smul.addr %s476, 8
        %s478 = scalar_lea.vmem %s5, %s477
        // Predicated region
        $region41: #{tpu_custom_call.1} parent=35 // pred_check
          %p479 = pneg %p173
        $region42: #{tpu_custom_call.1} parent=35 // pred_check_branch
          %481 = sbr.rel (%p479) target = $region44
        $region43: #{tpu_custom_call.1} parent=35 // pred_region
          %s482 = smul.u32 4, %s29
          %s483 = smul.u32 3, %s30
        $region44: #{tpu_custom_call.1} parent=35 // pred_fallthru
          _
      $region36: #{tpu_custom_call.1} parent=5 // pred_fallthru
        _
      %p484 = scmp.le.s32.totalorder 2, %s18
      // Predicated region
      $region45: #{tpu_custom_call.1} parent=5 // pred_check
        %p485 = pneg %p484
      $region46: #{tpu_custom_call.1} parent=5 // pred_check_branch
        %487 = sbr.rel (%p485) target = $region48
      $region47: #{tpu_custom_call.1} parent=5 // pred_region
        %s488 = ssub.s32 %s18, 2
        // Predicated region
        $region49: #{tpu_custom_call.1} parent=47 // pred_check
          %p489 = pneg %p179
        $region50: #{tpu_custom_call.1} parent=47 // pred_check_branch
          %491 = sbr.rel (%p489) target = $region52
        $region51: #{tpu_custom_call.1} parent=47 // pred_region
          %s492 = smul.u32 4, %s32
          %s493 = smul.u32 3, %s33
          %p494 = scmp.lt.s32.totalorder %s31, 1
          %s495 = scalar_select %p494, %s31, 1
          %p496 = scmp.lt.s32.totalorder %s492, 3
          %s497 = scalar_select %p496, %s492, 3
          %p498 = scmp.lt.s32.totalorder %s493, 2
          %s499 = scalar_select %p498, %s493, 2
          %s500 = smul.addr %s497, 3
          %s501 = sadd.s32 %s499, %s500
          %s502 = smul.addr %s495, 12
          %s503 = sadd.s32 %s501, %s502
          %s504 = smul.addr %s503, 8
          %s505 = scalar_lea.vmem %s5, %s504
        $region52: #{tpu_custom_call.1} parent=47 // pred_fallthru
          _
      $region48: #{tpu_custom_call.1} parent=5 // pred_fallthru
        _
    $region6: #{tpu_custom_call.1} parent=1 // loop_footer
      %s22 = sadd.s32 1, %s18
    $region7: #{tpu_custom_call.1} parent=1 // loop_footer_branch
      %17 = sbr.rel target = $region3
    $region8: #{tpu_custom_call.1} parent=1 // loop_exit
      _
    %506 = vsyncpa [#allocation5], 1
    %s507 = scalar_lea.sflag [#allocation5], 1
    %508 = vsyncpa %s507, 1

</llo_original>
